<compile_context>
chip_gen: v6e
topology: v6e:2x2x1
jax: 0.10.0
libtpu: 0.0.40
codegen_flags: <defaults>
</compile_context>

<pallas_src>
import math

import jax
import jax.numpy as jnp
from jax.experimental import pallas as pl
from jax.experimental.pallas import tpu as pltpu


def _normalize_kernel(x_ref, mean_ref, inv_std_ref, o_ref):
    # Pure elementwise hot path; all operands resident in VMEM.
    x = x_ref[...].astype(jnp.float32)
    m = mean_ref[...]          # (1, tile_f) float32, broadcasts over batch rows
    inv_s = inv_std_ref[...]   # (1, tile_f) float32, reciprocal precomputed
    o_ref[...] = ((x - m) * inv_s).astype(o_ref.dtype)


def _cdiv(a, b):
    return (a + b - 1) // b


def _round_down(a, m):
    return (a // m) * m


def normalize(x, mean, std, *, max_block_bytes=None, vmem_limit_bytes=None, eps=1e-12):
    """(x - mean) / std with mean/std of shape (features,), (1, features) or scalar."""
    B, F = x.shape
    # PyTorch semantics: float in -> same float out; integer in -> float out.
    out_dtype = x.dtype if jnp.issubdtype(x.dtype, jnp.floating) else jnp.float32

    # ---- stats prepared once in the wrapper, kept in float32 ---------------
    mean_f32 = jnp.broadcast_to(jnp.asarray(mean, jnp.float32).reshape(1, -1), (1, F))
    std_f32 = jnp.broadcast_to(jnp.asarray(std, jnp.float32).reshape(1, -1), (1, F))
    # Guard zero / near-zero std without changing the sign of legitimate values.
    std_safe = jnp.where(jnp.abs(std_f32) < eps, jnp.float32(eps), std_f32)
    inv_std_f32 = 1.0 / std_safe

    # ---- generation-aware VMEM / block budgets ------------------------------
    try:
        vmem_cap = int(pltpu.get_tpu_info().vmem_capacity_bytes)
    except Exception:  # pragma: no cover - conservative fallback off-TPU/older jax
        vmem_cap = None
    if vmem_limit_bytes is None:
        # ~75% of physical per-TC VMEM: 96 MiB on v5e/v6e, 48 MiB on v7x.
        vmem_limit_bytes = (vmem_cap * 3 // 4) if vmem_cap else (48 << 20)
    if max_block_bytes is None:
        # 8 MiB blocks on 128-MiB-VMEM parts, 4 MiB on 64-MiB parts / unknown.
        if vmem_cap is not None and vmem_cap > (96 << 20):
            max_block_bytes = 8 << 20
        else:
            max_block_bytes = 4 << 20

    # ---- lane-dense layout: fold batch rows into the lane axis if needed ----
    x_eff, mean_eff, inv_eff = x, mean_f32, inv_std_f32
    B_eff, F_eff = B, F
    if F % 128 != 0:
        k = 128 // math.gcd(F, 128)   # minimal fold factor making k*F lane-dense
        if k <= B and B % k == 0:
            B_eff, F_eff = B // k, k * F
            x_eff = x.reshape(B_eff, F_eff)
            mean_eff = jnp.tile(mean_f32, (1, k))
            inv_eff = jnp.tile(inv_std_f32, (1, k))
        # else: fall back to full-F blocks (correct; last-dim == full extent,
        # just pays masked lane stores for ragged F).

    # ---- block sizing --------------------------------------------------------
    itemsize = jnp.dtype(x.dtype).itemsize
    # Sublane packing factor: 8 rows/vreg for 32-bit, 16 for 16-bit, 32 for 8-bit.
    pack = 8 * max(1, 4 // itemsize)
    lane_dense = (F_eff % 128 == 0)

    # Feature tiling only when lane-dense and pack full-width rows blow the budget.
    if lane_dense and pack * F_eff * itemsize > max_block_bytes:
        tile_f = _round_down(max_block_bytes // (pack * itemsize), 128)
        tile_f = max(128, min(tile_f, F_eff))
    else:
        tile_f = F_eff

    # Batch rows per block under the byte budget.
    tile_b = max(pack, _round_down(max_block_bytes // (tile_f * itemsize), pack))
    # Keep >= ~4 grid steps along batch when B permits (pipelining + v7x dual-TC).
    if B_eff >= 4 * pack:
        tile_b = min(tile_b, max(pack, _round_down(_cdiv(B_eff, 4), pack)))
    tile_b = min(tile_b, B_eff)   # block == full dim is always legal

    grid_b = _cdiv(B_eff, tile_b)
    if tile_f == F_eff:
        grid = (grid_b,)
        in_specs = [
            pl.BlockSpec((tile_b, F_eff), lambda i: (i, 0)),
            # stats: constant block index -> DMA'd once, stays resident in VMEM
            pl.BlockSpec((1, F_eff), lambda i: (0, 0)),
            pl.BlockSpec((1, F_eff), lambda i: (0, 0)),
        ]
        out_spec = pl.BlockSpec((tile_b, F_eff), lambda i: (i, 0))
        dim_sem = ("parallel",)
    else:
        grid_f = _cdiv(F_eff, tile_f)
        grid = (grid_b, grid_f)
        in_specs = [
            pl.BlockSpec((tile_b, tile_f), lambda i, j: (i, j)),
            pl.BlockSpec((1, tile_f), lambda i, j: (0, j)),
            pl.BlockSpec((1, tile_f), lambda i, j: (0, j)),
        ]
        out_spec = pl.BlockSpec((tile_b, tile_f), lambda i, j: (i, j))
        dim_sem = ("parallel", "parallel")

    out = pl.pallas_call(
        _normalize_kernel,
        out_shape=jax.ShapeDtypeStruct((B_eff, F_eff), out_dtype),
        grid_spec=pltpu.PrefetchScalarGridSpec(
            num_scalar_prefetch=0,
            grid=grid,
            in_specs=in_specs,
            out_specs=out_spec,
        ),
        compiler_params=pltpu.CompilerParams(
            dimension_semantics=dim_sem,
            vmem_limit_bytes=vmem_limit_bytes,
        ),
    )(x_eff, mean_eff, inv_eff)

    return out.reshape(B, F)


if __name__ == "__main__":
    key = jax.random.PRNGKey(0)

    def run_case(key, B, F, dtype):
        kx, key = jax.random.split(key)
        x = (jax.random.normal(kx, (B, F), dtype=jnp.float32) * 3.0 + 1.5).astype(dtype)
        mean = jnp.linspace(-1.0, 1.0, F, dtype=jnp.float32)
        std = jnp.linspace(0.5, 2.0, F, dtype=jnp.float32)

        out = normalize(x, mean, std)
        jax.block_until_ready(out)

        ref = (x.astype(jnp.float32) - mean[None, :]) / std[None, :]
        assert out.shape == x.shape, (out.shape, x.shape)
        assert out.dtype == x.dtype, (out.dtype, x.dtype)
        if dtype == jnp.float32:
            rtol, atol = 1e-5, 1e-6
        else:  # bf16: final downcast dominates the error
            rtol, atol = 2e-2, 2e-2
        assert jnp.allclose(out.astype(jnp.float32), ref, rtol=rtol, atol=atol), (
            f"mismatch vs reference for B={B}, F={F}, dtype={dtype}"
        )
        return key

    # Folded lane-dense path: F=48 -> fold factor 8 -> blocks of width 384.
    key = run_case(key, 16, 48, jnp.float32)
    # Already lane-dense path (F % 128 == 0).
    key = run_case(key, 16, 256, jnp.float32)
    # Fallback path (F=7 cannot be folded with B=16): full-F masked blocks.
    key = run_case(key, 16, 7, jnp.float32)
    # bf16 input with f32 stats path.
    key = run_case(key, 32, 64, jnp.bfloat16)

    print("KERNEL_OK")
</pallas_src>

<mosaic_0001>
module attributes {stable_mosaic.version = 11 : i64} {
  func.func @_normalize_kernel(%arg0: i32, %arg1: memref<2x384xf32, #tpu.memory_space<vmem>>, %arg2: memref<1x384xf32, #tpu.memory_space<vmem>>, %arg3: memref<1x384xf32, #tpu.memory_space<vmem>>, %arg4: memref<2x384xf32, #tpu.memory_space<vmem>>) attributes {dimension_semantics = [#tpu.dimension_semantics<parallel>], iteration_bounds = array<i64: 1>, scalar_prefetch = 0 : i64, scratch_operands = 0 : i64, tpu.core_type = #tpu.core_type<tc>, window_params = [{transform_indices = @transform_0, window_bounds = array<i64: 2, 384>}, {pipeline_mode = #tpu.pipeline_mode<synchronous>, transform_indices = @transform_1, window_bounds = array<i64: 1, 384>}, {pipeline_mode = #tpu.pipeline_mode<synchronous>, transform_indices = @transform_2, window_bounds = array<i64: 1, 384>}, {transform_indices = @transform_3, window_bounds = array<i64: 2, 384>}]} {
    %c0 = arith.constant 0 : index
    %c0_0 = arith.constant 0 : index
    %0 = vector.load %arg1[%c0, %c0_0] : memref<2x384xf32, #tpu.memory_space<vmem>>, vector<2x384xf32>
    %c0_1 = arith.constant 0 : index
    %c0_2 = arith.constant 0 : index
    %1 = vector.load %arg2[%c0_1, %c0_2] : memref<1x384xf32, #tpu.memory_space<vmem>>, vector<1x384xf32>
    %c0_3 = arith.constant 0 : index
    %c0_4 = arith.constant 0 : index
    %2 = vector.load %arg3[%c0_3, %c0_4] : memref<1x384xf32, #tpu.memory_space<vmem>>, vector<1x384xf32>
    %3 = vector.broadcast %1 : vector<1x384xf32> to vector<2x384xf32>
    %4 = arith.subf %0, %3 : vector<2x384xf32>
    %5 = vector.broadcast %2 : vector<1x384xf32> to vector<2x384xf32>
    %6 = arith.mulf %4, %5 : vector<2x384xf32>
    %c0_5 = arith.constant 0 : index
    %c0_6 = arith.constant 0 : index
    %7 = vector.load %arg4[%c0_5, %c0_6] : memref<2x384xf32, #tpu.memory_space<vmem>>, vector<2x384xf32>
    tpu.vector_store %arg4[%c0_5, %c0_6], %6 {strides = array<i32>} : memref<2x384xf32, #tpu.memory_space<vmem>>, vector<2x384xf32>,
    return
  }
  func.func @transform_0(%arg0: i32) -> (i32, i32) {
    %c0_i32 = arith.constant 0 : i32
    %c0_i32_0 = arith.constant 0 : i32
    return %arg0, %c0_i32 : i32, i32
  }
  func.func @transform_1(%arg0: i32) -> (i32, i32) {
    %c0_i32 = arith.constant 0 : i32
    %c0_i32_0 = arith.constant 0 : i32
    %c0_i32_1 = arith.constant 0 : i32
    return %c0_i32, %c0_i32_0 : i32, i32
  }
  func.func @transform_2(%arg0: i32) -> (i32, i32) {
    %c0_i32 = arith.constant 0 : i32
    %c0_i32_0 = arith.constant 0 : i32
    %c0_i32_1 = arith.constant 0 : i32
    return %c0_i32, %c0_i32_0 : i32, i32
  }
  func.func @transform_3(%arg0: i32) -> (i32, i32) {
    %c0_i32 = arith.constant 0 : i32
    %c0_i32_0 = arith.constant 0 : i32
    return %arg0, %c0_i32 : i32, i32
  }
}

</mosaic_0001>

<llo_original>
// kernel: tpu_custom_call.1
$region0: #{tpu_custom_call.1}
  #allocation0 [shape = 'u32[]', space=smem, size = 0x4, offset = 0x4, fixed_abs, tag = 'smem constant byte address 0x4 - core index']
  #allocation1 [shape = 'u32[144,128]{1,0:T(1,128)}', space=vmem, size = 0x12000, scoped, tag = 'internal scratch']
  %s0 = inlined_call_operand.hbm [shape: f32[2,384], index: 0, kind: input, shape index: {}]
  %s1 = inlined_call_operand.hbm [shape: f32[1,384], index: 1, kind: input, shape index: {}]
  %s2 = inlined_call_operand.vmem [shape: f32[1,384], index: 2, kind: input, shape index: {}]
  %s3 = inlined_call_operand.hbm [shape: f32[2,384], index: 3, kind: output, shape index: {}]
  %s4 = sld [smem:[#allocation0]]
  $region30: #{tpu_custom_call.1} parent=0
    _
  %s6 = ssub.s32 1, %s4
  %s7 = scalar_select 0, %s6, %s4
  $region1: #{tpu_custom_call.1} parent=0
    #allocation2 [shape = 'u8[3072]{0}', space=vmem, size = 0xc00, scoped, tag = 'input window, operand 0, single buffered']
    #allocation3 [shape = 's32[1]{0}', space=sflag, size = 0x4, scoped, tag = 'scoped memory for tpu_custom_call.1']
    #allocation4 [shape = 's32[1]{0}', space=sflag, size = 0x4, scoped, tag = 'scoped memory for tpu_custom_call.1']
    #allocation5 [shape = 'u8[1536]{0}', space=vmem, size = 0x800, scoped, tag = 'input window, operand 1, single buffered']
    #allocation6 [shape = 's32[1]{0}', space=sflag, size = 0x4, scoped, tag = 'scoped memory for tpu_custom_call.1']
    #allocation7 [shape = 'u8[3072]{0}', space=vmem, size = 0xc00, scoped, tag = 'output window, operand 0, single buffered']
    %8 = vsyncpa [#allocation3], 0
    %9 = vsyncpa [#allocation6], 0
    %10 = vsyncpa [#allocation4], 0
    // Predicated region
    $region2: #{tpu_custom_call.1} parent=1 // pred_check
      _
    $region3: #{tpu_custom_call.1} parent=1 // pred_check_branch
      %12 = sbr.rel (0) target = $region5
    $region4: #{tpu_custom_call.1} parent=1 // pred_region
      %s14 = ssub.s32 96, 96
      %15 = vsyncadd [#allocation3], %s14
      %s17 = sshll.u32 [#allocation2], 4
      %s18 = int_to_ptr.vmem [resolvable:$true] %s17
      %20 = dma.hbm_to_vmem [thread:$0]  %s0, 96, %s18, [#allocation3]
    $region5: #{tpu_custom_call.1} parent=1 // pred_fallthru
      _
    // Predicated region
    $region6: #{tpu_custom_call.1} parent=1 // pred_check
      _
    $region7: #{tpu_custom_call.1} parent=1 // pred_check_branch
      %22 = sbr.rel (0) target = $region9
    $region8: #{tpu_custom_call.1} parent=1 // pred_region
      %s24 = ssub.s32 48, 48
      %25 = vsyncadd [#allocation6], %s24
      %s27 = sshll.u32 [#allocation5], 4
      %s28 = int_to_ptr.vmem [resolvable:$true] %s27
      %30 = dma.hbm_to_vmem [thread:$0]  %s1, 48, %s28, [#allocation6]
    $region9: #{tpu_custom_call.1} parent=1 // pred_fallthru
      _
    // Predicated region
    $region10: #{tpu_custom_call.1} parent=1 // pred_check
      _
    $region11: #{tpu_custom_call.1} parent=1 // pred_check_branch
      %32 = sbr.rel (0) target = $region13
    $region12: #{tpu_custom_call.1} parent=1 // pred_region
      _
    $region13: #{tpu_custom_call.1} parent=1 // pred_fallthru
      _
    // Predicated region
    $region14: #{tpu_custom_call.1} parent=1 // pred_check
      _
    $region15: #{tpu_custom_call.1} parent=1 // pred_check_branch
      %34 = sbr.rel (0) target = $region17
    $region16: #{tpu_custom_call.1} parent=1 // pred_region
      %35 = dma.done [#allocation3], 96
    $region17: #{tpu_custom_call.1} parent=1 // pred_fallthru
      _
    // Predicated region
    $region18: #{tpu_custom_call.1} parent=1 // pred_check
      _
    $region19: #{tpu_custom_call.1} parent=1 // pred_check_branch
      %37 = sbr.rel (0) target = $region21
    $region20: #{tpu_custom_call.1} parent=1 // pred_region
      %38 = dma.done [#allocation6], 48
    $region21: #{tpu_custom_call.1} parent=1 // pred_fallthru
      _
    %v39 = vld [vmem:[#allocation2] sm:$0x3f]
    %v40 = vld [vmem:[#allocation5] sm:$0x7]
    %v41 = vld [vmem:[%s2] sm:$0x7]
    %v43 = vlaneseq
    %v44 = vshrl.u32 %v43, 7
    %v45 = vsub.s32 0, %v44
    %v46 = vrot.slane %v40, %v45
    %v47 = vlaneseq
    %v48 = vshrl.u32 %v47, 7
    %v49 = vsub.s32 1, %v48
    %v50 = vrot.slane %v40, %v49
    %v51 = vlaneseq
    %v52 = vshrl.u32 %v51, 7
    %v53 = vsub.s32 2, %v52
    %v54 = vrot.slane %v40, %v53
    %v55 = vcombine.low %v46, %v50
    %v57 = vunpack.c.l.s4 1983009808
    %v58 = vunpack.c.0.s8 %v57
    %v59 = vlaneseq
    %v60 = vshrl.u32 %v59, 7
    %v61 = vsub.s32 %v58, %v60
    %v62 = vrot.slane %v55, %v61
    %v64 = vunpack.c.l.s4 1983009808
    %v65 = vunpack.c.0.s8 %v64
    %v66 = vlaneseq
    %v67 = vshrl.u32 %v66, 7
    %v68 = vsub.s32 %v65, %v67
    %v69 = vrot.slane %v54, %v68
    %v70 = vcombine.low %v62, %v69
    %v72 = vsub.f32 %v39, %v70
    %v74 = vlaneseq
    %v75 = vshrl.u32 %v74, 7
    %v76 = vsub.s32 0, %v75
    %v77 = vrot.slane %v41, %v76
    %v78 = vlaneseq
    %v79 = vshrl.u32 %v78, 7
    %v80 = vsub.s32 1, %v79
    %v81 = vrot.slane %v41, %v80
    %v82 = vlaneseq
    %v83 = vshrl.u32 %v82, 7
    %v84 = vsub.s32 2, %v83
    %v85 = vrot.slane %v41, %v84
    %v86 = vcombine.low %v77, %v81
    %v88 = vunpack.c.l.s4 1983009808
    %v89 = vunpack.c.0.s8 %v88
    %v90 = vlaneseq
    %v91 = vshrl.u32 %v90, 7
    %v92 = vsub.s32 %v89, %v91
    %v93 = vrot.slane %v86, %v92
    %v95 = vunpack.c.l.s4 1983009808
    %v96 = vunpack.c.0.s8 %v95
    %v97 = vlaneseq
    %v98 = vshrl.u32 %v97, 7
    %v99 = vsub.s32 %v96, %v98
    %v100 = vrot.slane %v85, %v99
    %v101 = vcombine.low %v93, %v100
    %v103 = vmul.f32 %v72, %v101
    %104 = vst [vmem:[#allocation7] sm:$0x3f] %v103
    // Predicated region
    $region22: #{tpu_custom_call.1} parent=1 // pred_check
      _
    $region23: #{tpu_custom_call.1} parent=1 // pred_check_branch
      %106 = sbr.rel (0) target = $region25
    $region24: #{tpu_custom_call.1} parent=1 // pred_region
      %s108 = ssub.s32 96, 96
      %109 = vsyncadd [#allocation4], %s108
      %s111 = sshll.u32 [#allocation7], 4
      %s112 = int_to_ptr.vmem [resolvable:$true] %s111
      %114 = dma.vmem_to_hbm [thread:$0]  %s112, 96, %s3, [#allocation4]
    $region25: #{tpu_custom_call.1} parent=1 // pred_fallthru
      _
    // Predicated region
    $region26: #{tpu_custom_call.1} parent=1 // pred_check
      _
    $region27: #{tpu_custom_call.1} parent=1 // pred_check_branch
      %116 = sbr.rel (0) target = $region29
    $region28: #{tpu_custom_call.1} parent=1 // pred_region
      %117 = dma.done [#allocation4], 96
    $region29: #{tpu_custom_call.1} parent=1 // pred_fallthru
      _
    %118 = vsyncpa [#allocation3], 1
    %119 = vsyncpa [#allocation6], 1
    %120 = vsyncpa [#allocation4], 1

</llo_original>
